<compile_context>
chip_gen: v6e
topology: v6e:2x2x1
jax: 0.10.0
libtpu: 0.0.40
codegen_flags: <defaults>
</compile_context>

<pallas_src>
import jax
import jax.numpy as jnp
from jax.experimental import pallas as pl
from jax.experimental.pallas import tpu as pltpu

LN_EPS = 1e-5


def _round_up(x, m):
    return ((x + m - 1) // m) * m


def ffn_kernel(x_ref, w1_ref, b1_ref, w2_ref, b2_ref, gamma_ref, beta_ref,
               o_ref, acc_ref):
    # Grid: (row_tiles, hidden_chunks).  Axis 1 is the reduction over H chunks.
    j = pl.program_id(1)
    nj = pl.num_programs(1)

    x_blk = x_ref[...]                                   # (tm, D), native dtype
    x_f32 = x_blk.astype(jnp.float32)
    x_bf = x_blk.astype(jnp.bfloat16)

    @pl.when(j == 0)
    def _():
        # Initialize accumulator with residual + second-layer bias.
        acc_ref[...] = x_f32 + b2_ref[...]

    # w_1 (Conv1d k=1) chunk: bf16 MXU matmul, f32 accumulation, bias + ReLU.
    h = jnp.dot(x_bf, w1_ref[...], preferred_element_type=jnp.float32)
    h = jnp.maximum(h + b1_ref[...], 0.0)                # (tm, th)

    # w_2 (Conv1d k=1) chunk: accumulate into the f32 (tm, D) scratch.
    acc_ref[...] += jnp.dot(h.astype(jnp.bfloat16), w2_ref[...],
                            preferred_element_type=jnp.float32)

    @pl.when(j == nj - 1)
    def _():
        # Epilogue in f32: LayerNorm over the last dim, then affine.
        y = acc_ref[...]
        mean = jnp.mean(y, axis=-1, keepdims=True)
        var = jnp.mean((y - mean) ** 2, axis=-1, keepdims=True)
        y_norm = (y - mean) * jax.lax.rsqrt(var + LN_EPS)
        out = y_norm * gamma_ref[...] + beta_ref[...]
        o_ref[...] = out.astype(o_ref.dtype)


def positionwise_feed_forward(x, w1, b1, w2, b2, gamma, beta, *, tm=256, th=512):
    """PositionwiseFeedForward forward pass.

    x:     (B, L, D)
    w1:    (D, H)  -- PyTorch Conv1d(d_in, d_hid, 1).weight is (H, D, 1);
                       pass weight[:, :, 0].T here.
    b1:    (H,)
    w2:    (H, D)  -- Conv1d(d_hid, d_in, 1).weight[:, :, 0].T
    b2:    (D,)
    gamma, beta: (D,) LayerNorm affine params.
    tm:    row tile (tokens per grid step), multiple of 8.
    th:    hidden-dim chunk (multiple of 128 when H > th).
    """
    B, L, D = x.shape
    Dw, H = w1.shape
    assert Dw == D and w2.shape == (H, D)
    assert b1.shape == (H,) and b2.shape == (D,)

    M = B * L

    # Row tile: clamp for tiny inputs, keep it a multiple of 8, pad M to it.
    tm = _round_up(max(8, min(tm, _round_up(M, 8))), 8)
    M_pad = _round_up(M, tm)

    # Hidden-dim chunking: single chunk if H is small, otherwise 128-aligned
    # chunks with H zero-padded to a multiple of the chunk size.
    if H <= th:
        th_eff, H_pad = H, H
    else:
        th_eff = _round_up(th, 128)
        H_pad = _round_up(H, th_eff)

    # Keep x in its native dtype (cast happens on-chip); only pad rows.
    x2 = x.reshape(M, D)
    if M_pad != M:
        x2 = jnp.pad(x2, ((0, M_pad - M), (0, 0)))

    # Weights in bf16 (halves VMEM/DMA, hits MXU bf16 peak); biases/LN in f32.
    w1_p = w1.astype(jnp.bfloat16)
    w2_p = w2.astype(jnp.bfloat16)
    b1_p = b1.astype(jnp.float32).reshape(1, H)
    if H_pad != H:
        w1_p = jnp.pad(w1_p, ((0, 0), (0, H_pad - H)))
        w2_p = jnp.pad(w2_p, ((0, H_pad - H), (0, 0)))
        b1_p = jnp.pad(b1_p, ((0, 0), (0, H_pad - H)))
    b2_p = b2.astype(jnp.float32).reshape(1, D)
    gamma_p = gamma.astype(jnp.float32).reshape(1, D)
    beta_p = beta.astype(jnp.float32).reshape(1, D)

    grid = (M_pad // tm, H_pad // th_eff)

    bytes_x = x2.size * x2.dtype.itemsize
    cost = pl.CostEstimate(
        flops=4 * M_pad * D * H_pad,
        transcendentals=M_pad,
        bytes_accessed=(bytes_x + M_pad * D * x.dtype.itemsize
                        + w1_p.size * 2 + w2_p.size * 2),
    )

    out = pl.pallas_call(
        ffn_kernel,
        out_shape=jax.ShapeDtypeStruct((M_pad, D), x.dtype),
        grid_spec=pltpu.PrefetchScalarGridSpec(
            num_scalar_prefetch=0,
            grid=grid,
            in_specs=[
                pl.BlockSpec((tm, D), lambda i, j: (i, 0)),        # x rows
                pl.BlockSpec((D, th_eff), lambda i, j: (0, j)),    # W1 chunk
                pl.BlockSpec((1, th_eff), lambda i, j: (0, j)),    # b1 chunk
                pl.BlockSpec((th_eff, D), lambda i, j: (j, 0)),    # W2 chunk
                pl.BlockSpec((1, D), lambda i, j: (0, 0)),         # b2
                pl.BlockSpec((1, D), lambda i, j: (0, 0)),         # gamma
                pl.BlockSpec((1, D), lambda i, j: (0, 0)),         # beta
            ],
            out_specs=pl.BlockSpec((tm, D), lambda i, j: (i, 0)),
            scratch_shapes=[pltpu.VMEM((tm, D), jnp.float32)],     # f32 accum
        ),
        compiler_params=pltpu.CompilerParams(
            dimension_semantics=("parallel", "arbitrary"),
            vmem_limit_bytes=32 * 1024 * 1024,
        ),
        cost_estimate=cost,
    )(x2, w1_p, b1_p, w2_p, b2_p, gamma_p, beta_p)

    return out[:M].reshape(B, L, D)


def reference_f32(x, w1, b1, w2, b2, gamma, beta):
    xf = x.astype(jnp.float32)
    h = jnp.maximum(jnp.dot(xf, w1) + b1, 0.0)
    y = jnp.dot(h, w2) + b2 + xf
    mean = jnp.mean(y, axis=-1, keepdims=True)
    var = jnp.mean((y - mean) ** 2, axis=-1, keepdims=True)
    return ((y - mean) * jax.lax.rsqrt(var + LN_EPS)) * gamma + beta


def reference_bf16(x, w1, b1, w2, b2, gamma, beta):
    """Mirrors the kernel's bf16-matmul / f32-epilogue numerics."""
    xf = x.astype(jnp.float32)
    h = jnp.dot(xf.astype(jnp.bfloat16), w1.astype(jnp.bfloat16),
                preferred_element_type=jnp.float32) + b1
    h = jnp.maximum(h, 0.0)
    y = jnp.dot(h.astype(jnp.bfloat16), w2.astype(jnp.bfloat16),
                preferred_element_type=jnp.float32) + b2 + xf
    mean = jnp.mean(y, axis=-1, keepdims=True)
    var = jnp.mean((y - mean) ** 2, axis=-1, keepdims=True)
    return ((y - mean) * jax.lax.rsqrt(var + LN_EPS)) * gamma + beta


if __name__ == "__main__":
    # Small, lane-aligned demo shapes: bsz=2, len=8, d_in=128, d_hid=256.
    B, L, D, H = 2, 8, 128, 256

    key = jax.random.PRNGKey(0)
    kx, kw1, kb1, kw2, kb2 = jax.random.split(key, 5)

    x = jax.random.normal(kx, (B, L, D), dtype=jnp.float32)

    # Build weights in PyTorch Conv1d layout, then convert explicitly:
    #   Conv1d(d_in, d_hid, 1).weight -> (H, D, 1);  kernel wants (D, H).
    w1_conv = jax.random.normal(kw1, (H, D, 1), dtype=jnp.float32) * 0.1
    w2_conv = jax.random.normal(kw2, (D, H, 1), dtype=jnp.float32) * 0.1
    b1 = jax.random.normal(kb1, (H,), dtype=jnp.float32) * 0.1
    b2 = jax.random.normal(kb2, (D,), dtype=jnp.float32) * 0.1
    w1 = jnp.transpose(w1_conv[:, :, 0])   # (D, H)
    w2 = jnp.transpose(w2_conv[:, :, 0])   # (H, D)

    gamma = jnp.ones((D,), dtype=jnp.float32)   # LayerNorm weight init
    beta = jnp.zeros((D,), dtype=jnp.float32)   # LayerNorm bias init

    out = positionwise_feed_forward(x, w1, b1, w2, b2, gamma, beta)
    out = jax.block_until_ready(out)
    assert out.shape == (B, L, D)

    # Tight check vs. a reference that mirrors the kernel's bf16/f32 numerics.
    ref_bf16 = reference_bf16(x, w1, b1, w2, b2, gamma, beta)
    assert jnp.allclose(out, ref_bf16, atol=2e-3, rtol=2e-3), \
        "mismatch vs bf16-mirrored reference"

    # Loose sanity check vs. pure-f32 math (bf16 matmul error budget).
    ref_f32 = reference_f32(x, w1, b1, w2, b2, gamma, beta)
    assert jnp.allclose(out, ref_f32, atol=5e-2, rtol=5e-2), \
        "mismatch vs f32 reference"

    print("KERNEL_OK")
</pallas_src>

<mosaic_0001>
module attributes {stable_mosaic.version = 11 : i64} {
  func.func @ffn_kernel(%arg0: i32, %arg1: i32, %arg2: memref<16x128xf32, #tpu.memory_space<vmem>>, %arg3: memref<128x256xbf16, #tpu.memory_space<vmem>>, %arg4: memref<1x256xf32, #tpu.memory_space<vmem>>, %arg5: memref<256x128xbf16, #tpu.memory_space<vmem>>, %arg6: memref<1x128xf32, #tpu.memory_space<vmem>>, %arg7: memref<1x128xf32, #tpu.memory_space<vmem>>, %arg8: memref<1x128xf32, #tpu.memory_space<vmem>>, %arg9: memref<16x128xf32, #tpu.memory_space<vmem>>, %arg10: memref<16x128xf32, #tpu.memory_space<vmem>>) attributes {dimension_semantics = [#tpu.dimension_semantics<parallel>, #tpu.dimension_semantics<arbitrary>], iteration_bounds = array<i64: 1, 1>, scalar_prefetch = 0 : i64, scratch_operands = 1 : i64, tpu.core_type = #tpu.core_type<tc>, window_params = [{transform_indices = @transform_0, window_bounds = array<i64: 16, 128>}, {transform_indices = @transform_1, window_bounds = array<i64: 128, 256>}, {transform_indices = @transform_2, window_bounds = array<i64: 1, 256>}, {transform_indices = @transform_3, window_bounds = array<i64: 256, 128>}, {pipeline_mode = #tpu.pipeline_mode<synchronous>, transform_indices = @transform_4, window_bounds = array<i64: 1, 128>}, {pipeline_mode = #tpu.pipeline_mode<synchronous>, transform_indices = @transform_5, window_bounds = array<i64: 1, 128>}, {pipeline_mode = #tpu.pipeline_mode<synchronous>, transform_indices = @transform_6, window_bounds = array<i64: 1, 128>}, {transform_indices = @transform_7, window_bounds = array<i64: 16, 128>}]} {
    %c0 = arith.constant 0 : index
    %c0_0 = arith.constant 0 : index
    %0 = vector.load %arg2[%c0, %c0_0] : memref<16x128xf32, #tpu.memory_space<vmem>>, vector<16x128xf32>
    %1 = arith.truncf %0 : vector<16x128xf32> to vector<16x128xbf16>
    %c0_i32 = arith.constant 0 : i32
    %2 = arith.cmpi eq, %arg1, %c0_i32 : i32
    %3 = arith.extui %2 : i1 to i32
    %c0_i32_1 = arith.constant 0 : i32
    %4 = arith.cmpi ne, %3, %c0_i32_1 : i32
    scf.if %4 {
      %c0_16 = arith.constant 0 : index
      %c0_17 = arith.constant 0 : index
      %21 = vector.load %arg6[%c0_16, %c0_17] : memref<1x128xf32, #tpu.memory_space<vmem>>, vector<1x128xf32>
      %22 = vector.broadcast %21 : vector<1x128xf32> to vector<16x128xf32>
      %23 = arith.addf %0, %22 : vector<16x128xf32>
      %c0_18 = arith.constant 0 : index
      %c0_19 = arith.constant 0 : index
      %24 = vector.load %arg10[%c0_18, %c0_19] : memref<16x128xf32, #tpu.memory_space<vmem>>, vector<16x128xf32>
      tpu.vector_store %arg10[%c0_18, %c0_19], %23 {strides = array<i32>} : memref<16x128xf32, #tpu.memory_space<vmem>>, vector<16x128xf32>,
    } else {
    }
    %c0_2 = arith.constant 0 : index
    %c0_3 = arith.constant 0 : index
    %5 = vector.load %arg3[%c0_2, %c0_3] : memref<128x256xbf16, #tpu.memory_space<vmem>>, vector<128x256xbf16>
    %cst = arith.constant dense<0.000000e+00> : vector<16x256xf32>
    %6 = tpu.matmul %1, %5, %cst {dimension_numbers = #tpu.dot_dimension_numbers<[1], [0], [0], [1], [0, 0, 1, 1], [], []>} : vector<16x128xbf16>, vector<128x256xbf16>, vector<16x256xf32> -> vector<16x256xf32>
    %c0_4 = arith.constant 0 : index
    %c0_5 = arith.constant 0 : index
    %7 = vector.load %arg4[%c0_4, %c0_5] : memref<1x256xf32, #tpu.memory_space<vmem>>, vector<1x256xf32>
    %8 = vector.broadcast %7 : vector<1x256xf32> to vector<16x256xf32>
    %9 = arith.addf %6, %8 : vector<16x256xf32>
    %cst_6 = arith.constant 0.000000e+00 : f32
    %10 = vector.broadcast %cst_6 : f32 to vector<16x256xf32>
    %11 = arith.maximumf %9, %10 : vector<16x256xf32>
    %c0_7 = arith.constant 0 : index
    %c0_8 = arith.constant 0 : index
    %12 = vector.load %arg10[%c0_7, %c0_8] : memref<16x128xf32, #tpu.memory_space<vmem>>, vector<16x128xf32>
    %13 = arith.truncf %11 : vector<16x256xf32> to vector<16x256xbf16>
    %c0_9 = arith.constant 0 : index
    %c0_10 = arith.constant 0 : index
    %14 = vector.load %arg5[%c0_9, %c0_10] : memref<256x128xbf16, #tpu.memory_space<vmem>>, vector<256x128xbf16>
    %cst_11 = arith.constant dense<0.000000e+00> : vector<16x128xf32>
    %15 = tpu.matmul %13, %14, %cst_11 {dimension_numbers = #tpu.dot_dimension_numbers<[1], [0], [0], [1], [0, 0, 1, 1], [], []>} : vector<16x256xbf16>, vector<256x128xbf16>, vector<16x128xf32> -> vector<16x128xf32>
    %16 = arith.addf %12, %15 : vector<16x128xf32>
    %c0_12 = arith.constant 0 : index
    %c0_13 = arith.constant 0 : index
    %17 = vector.load %arg10[%c0_12, %c0_13] : memref<16x128xf32, #tpu.memory_space<vmem>>, vector<16x128xf32>
    tpu.vector_store %arg10[%c0_12, %c0_13], %16 {strides = array<i32>} : memref<16x128xf32, #tpu.memory_space<vmem>>, vector<16x128xf32>,
    %c0_i32_14 = arith.constant 0 : i32
    %18 = arith.cmpi eq, %arg1, %c0_i32_14 : i32
    %19 = arith.extui %18 : i1 to i32
    %c0_i32_15 = arith.constant 0 : i32
    %20 = arith.cmpi ne, %19, %c0_i32_15 : i32
    scf.if %20 {
      %c0_16 = arith.constant 0 : index
      %c0_17 = arith.constant 0 : index
      %21 = vector.load %arg10[%c0_16, %c0_17] : memref<16x128xf32, #tpu.memory_space<vmem>>, vector<16x128xf32>
      %cst_18 = arith.constant dense<0.000000e+00> : vector<16xf32>
      %22 = vector.multi_reduction <add>, %21, %cst_18 [1] : vector<16x128xf32> to vector<16xf32>
      %23 = vector.shape_cast %22 : vector<16xf32> to vector<16x1xf32>
      %cst_19 = arith.constant 1.280000e+02 : f32
      %24 = vector.broadcast %cst_19 : f32 to vector<16x1xf32>
      %25 = arith.divf %23, %24 : vector<16x1xf32>
      %26 = vector.broadcast %25 : vector<16x1xf32> to vector<16x128xf32>
      %27 = arith.subf %21, %26 : vector<16x128xf32>
      %28 = arith.mulf %27, %27 : vector<16x128xf32>
      %cst_20 = arith.constant dense<0.000000e+00> : vector<16xf32>
      %29 = vector.multi_reduction <add>, %28, %cst_20 [1] : vector<16x128xf32> to vector<16xf32>
      %30 = vector.shape_cast %29 : vector<16xf32> to vector<16x1xf32>
      %cst_21 = arith.constant 1.280000e+02 : f32
      %31 = vector.broadcast %cst_21 : f32 to vector<16x1xf32>
      %32 = arith.divf %30, %31 : vector<16x1xf32>
      %33 = vector.broadcast %25 : vector<16x1xf32> to vector<16x128xf32>
      %34 = arith.subf %21, %33 : vector<16x128xf32>
      %cst_22 = arith.constant 9.99999974E-6 : f32
      %35 = vector.broadcast %cst_22 : f32 to vector<16x1xf32>
      %36 = arith.addf %32, %35 : vector<16x1xf32>
      %37 = math.rsqrt %36 : vector<16x1xf32>
      %38 = vector.broadcast %37 : vector<16x1xf32> to vector<16x128xf32>
      %39 = arith.mulf %34, %38 : vector<16x128xf32>
      %c0_23 = arith.constant 0 : index
      %c0_24 = arith.constant 0 : index
      %40 = vector.load %arg7[%c0_23, %c0_24] : memref<1x128xf32, #tpu.memory_space<vmem>>, vector<1x128xf32>
      %41 = vector.broadcast %40 : vector<1x128xf32> to vector<16x128xf32>
      %42 = arith.mulf %39, %41 : vector<16x128xf32>
      %c0_25 = arith.constant 0 : index
      %c0_26 = arith.constant 0 : index
      %43 = vector.load %arg8[%c0_25, %c0_26] : memref<1x128xf32, #tpu.memory_space<vmem>>, vector<1x128xf32>
      %44 = vector.broadcast %43 : vector<1x128xf32> to vector<16x128xf32>
      %45 = arith.addf %42, %44 : vector<16x128xf32>
      %c0_27 = arith.constant 0 : index
      %c0_28 = arith.constant 0 : index
      %46 = vector.load %arg9[%c0_27, %c0_28] : memref<16x128xf32, #tpu.memory_space<vmem>>, vector<16x128xf32>
      tpu.vector_store %arg9[%c0_27, %c0_28], %45 {strides = array<i32>} : memref<16x128xf32, #tpu.memory_space<vmem>>, vector<16x128xf32>,
    } else {
    }
    return
  }
  func.func @transform_0(%arg0: i32, %arg1: i32) -> (i32, i32) {
    %c0_i32 = arith.constant 0 : i32
    %c0_i32_0 = arith.constant 0 : i32
    return %arg0, %c0_i32 : i32, i32
  }
  func.func @transform_1(%arg0: i32, %arg1: i32) -> (i32, i32) {
    %c0_i32 = arith.constant 0 : i32
    %c0_i32_0 = arith.constant 0 : i32
    return %c0_i32, %arg1 : i32, i32
  }
  func.func @transform_2(%arg0: i32, %arg1: i32) -> (i32, i32) {
    %c0_i32 = arith.constant 0 : i32
    %c0_i32_0 = arith.constant 0 : i32
    return %c0_i32, %arg1 : i32, i32
  }
  func.func @transform_3(%arg0: i32, %arg1: i32) -> (i32, i32) {
    %c0_i32 = arith.constant 0 : i32
    %c0_i32_0 = arith.constant 0 : i32
    return %arg1, %c0_i32 : i32, i32
  }
  func.func @transform_4(%arg0: i32, %arg1: i32) -> (i32, i32) {
    %c0_i32 = arith.constant 0 : i32
    %c0_i32_0 = arith.constant 0 : i32
    %c0_i32_1 = arith.constant 0 : i32
    return %c0_i32, %c0_i32_0 : i32, i32
  }
  func.func @transform_5(%arg0: i32, %arg1: i32) -> (i32, i32) {
    %c0_i32 = arith.constant 0 : i32
    %c0_i32_0 = arith.constant 0 : i32
    %c0_i32_1 = arith.constant 0 : i32
    return %c0_i32, %c0_i32_0 : i32, i32
  }
  func.func @transform_6(%arg0: i32, %arg1: i32) -> (i32, i32) {
    %c0_i32 = arith.constant 0 : i32
    %c0_i32_0 = arith.constant 0 : i32
    %c0_i32_1 = arith.constant 0 : i32
    return %c0_i32, %c0_i32_0 : i32, i32
  }
  func.func @transform_7(%arg0: i32, %arg1: i32) -> (i32, i32) {
    %c0_i32 = arith.constant 0 : i32
    %c0_i32_0 = arith.constant 0 : i32
    return %arg0, %c0_i32 : i32, i32
  }
}

</mosaic_0001>

<llo_original>
// kernel: tpu_custom_call.1
$region0: #{tpu_custom_call.1}
  #allocation0 [shape = 'u32[]', space=smem, size = 0x4, offset = 0x4, fixed_abs, tag = 'smem constant byte address 0x4 - core index']
  #allocation1 [shape = 'u32[144,128]{1,0:T(1,128)}', space=vmem, size = 0x12000, scoped, tag = 'internal scratch']
  #allocation2 [shape = 'f32[16,128]{1,0:T(8,128)}', space=vmem, size = 0x2000, scoped, tag = 'scratch operand']
  %s0 = inlined_call_operand.hbm [shape: f32[16,128], index: 0, kind: input, shape index: {}]
  %s1 = inlined_call_operand.hbm [shape: bf16[128,256], index: 1, kind: input, shape index: {}]
  %s2 = inlined_call_operand.vmem [shape: f32[1,256], index: 2, kind: input, shape index: {}]
  %s3 = inlined_call_operand.hbm [shape: bf16[256,128], index: 3, kind: input, shape index: {}]
  %s4 = inlined_call_operand.vmem [shape: f32[1,128], index: 4, kind: input, shape index: {}]
  %s5 = inlined_call_operand.vmem [shape: f32[1,128], index: 5, kind: input, shape index: {}]
  %s6 = inlined_call_operand.vmem [shape: f32[1,128], index: 6, kind: input, shape index: {}]
  %s7 = inlined_call_operand.hbm [shape: f32[16,128], index: 7, kind: output, shape index: {}]
  %s8 = sld [smem:[#allocation0]]
  $region58: #{tpu_custom_call.1} parent=0
    _
  %s10 = ssub.s32 1, %s8
  %s11 = scalar_select 0, %s10, %s8
  $region1: #{tpu_custom_call.1} parent=0
    #allocation3 [shape = 'u8[8192]{0}', space=vmem, size = 0x2000, scoped, tag = 'input window, operand 0, single buffered']
    #allocation4 [shape = 's32[1]{0}', space=sflag, size = 0x4, scoped, tag = 'scoped memory for tpu_custom_call.1']
    #allocation5 [shape = 's32[1]{0}', space=sflag, size = 0x4, scoped, tag = 'scoped memory for tpu_custom_call.1']
    #allocation6 [shape = 'u8[65536]{0}', space=vmem, size = 0x10000, scoped, tag = 'input window, operand 1, single buffered']
    #allocation7 [shape = 's32[1]{0}', space=sflag, size = 0x4, scoped, tag = 'scoped memory for tpu_custom_call.1']
    #allocation8 [shape = 'u8[65536]{0}', space=vmem, size = 0x10000, scoped, tag = 'input window, operand 3, single buffered']
    #allocation9 [shape = 'u8[8192]{0}', space=vmem, size = 0x2000, scoped, tag = 'output window, operand 0, single buffered']
    %12 = vsyncpa [#allocation4], 0
    %13 = vsyncpa [#allocation7], 0
    %14 = vsyncpa [#allocation5], 0
    // Predicated region
    $region2: #{tpu_custom_call.1} parent=1 // pred_check
      _
    $region3: #{tpu_custom_call.1} parent=1 // pred_check_branch
      %16 = sbr.rel (0) target = $region5
    $region4: #{tpu_custom_call.1} parent=1 // pred_region
      %s18 = ssub.s32 256, 256
      %19 = vsyncadd [#allocation4], %s18
      %s20 = sshll.u32 [#allocation3], 4
      %s21 = int_to_ptr.vmem [resolvable:$true] %s20
      %26 = dma.hbm_to_vmem [thread:$0]  %s0, 256, %s21, [#allocation4], 128, 128, 8
    $region5: #{tpu_custom_call.1} parent=1 // pred_fallthru
      _
    // Predicated region
    $region6: #{tpu_custom_call.1} parent=1 // pred_check
      _
    $region7: #{tpu_custom_call.1} parent=1 // pred_check_branch
      %28 = sbr.rel (0) target = $region9
    $region8: #{tpu_custom_call.1} parent=1 // pred_region
      %s30 = ssub.s32 2048, 2048
      %31 = vsyncadd [#allocation7], %s30
      %s32 = sshll.u32 [#allocation6], 4
      %s33 = int_to_ptr.vmem [resolvable:$true] %s32
      %38 = dma.hbm_to_vmem [thread:$0]  %s1, 2048, %s33, [#allocation7], 128, 128, 8
    $region9: #{tpu_custom_call.1} parent=1 // pred_fallthru
      _
    // Predicated region
    $region10: #{tpu_custom_call.1} parent=1 // pred_check
      _
    $region11: #{tpu_custom_call.1} parent=1 // pred_check_branch
      %40 = sbr.rel (0) target = $region13
    $region12: #{tpu_custom_call.1} parent=1 // pred_region
      _
    $region13: #{tpu_custom_call.1} parent=1 // pred_fallthru
      _
    // Predicated region
    $region14: #{tpu_custom_call.1} parent=1 // pred_check
      _
    $region15: #{tpu_custom_call.1} parent=1 // pred_check_branch
      %42 = sbr.rel (0) target = $region17
    $region16: #{tpu_custom_call.1} parent=1 // pred_region
      %s44 = ssub.s32 2048, 2048
      %45 = vsyncadd [#allocation7], %s44
      %s46 = sshll.u32 [#allocation8], 4
      %s47 = int_to_ptr.vmem [resolvable:$true] %s46
      %52 = dma.hbm_to_vmem [thread:$0]  %s3, 2048, %s47, [#allocation7], 64, 64, 4
    $region17: #{tpu_custom_call.1} parent=1 // pred_fallthru
      _
    // Predicated region
    $region18: #{tpu_custom_call.1} parent=1 // pred_check
      _
    $region19: #{tpu_custom_call.1} parent=1 // pred_check_branch
      %54 = sbr.rel (0) target = $region21
    $region20: #{tpu_custom_call.1} parent=1 // pred_region
      _
    $region21: #{tpu_custom_call.1} parent=1 // pred_fallthru
      _
    // Predicated region
    $region22: #{tpu_custom_call.1} parent=1 // pred_check
      _
    $region23: #{tpu_custom_call.1} parent=1 // pred_check_branch
      %56 = sbr.rel (0) target = $region25
    $region24: #{tpu_custom_call.1} parent=1 // pred_region
      _
    $region25: #{tpu_custom_call.1} parent=1 // pred_fallthru
      _
    // Predicated region
    $region26: #{tpu_custom_call.1} parent=1 // pred_check
      _
    $region27: #{tpu_custom_call.1} parent=1 // pred_check_branch
      %58 = sbr.rel (0) target = $region29
    $region28: #{tpu_custom_call.1} parent=1 // pred_region
      _
    $region29: #{tpu_custom_call.1} parent=1 // pred_fallthru
      _
    // Predicated region
    $region30: #{tpu_custom_call.1} parent=1 // pred_check
      _
    $region31: #{tpu_custom_call.1} parent=1 // pred_check_branch
      %60 = sbr.rel (0) target = $region33
    $region32: #{tpu_custom_call.1} parent=1 // pred_region
      %61 = dma.done [#allocation4], 256
    $region33: #{tpu_custom_call.1} parent=1 // pred_fallthru
      _
    // Predicated region
    $region34: #{tpu_custom_call.1} parent=1 // pred_check
      _
    $region35: #{tpu_custom_call.1} parent=1 // pred_check_branch
      %63 = sbr.rel (0) target = $region37
    $region36: #{tpu_custom_call.1} parent=1 // pred_region
      %64 = dma.done [#allocation7], 2048
    $region37: #{tpu_custom_call.1} parent=1 // pred_fallthru
      _
    // Predicated region
    $region38: #{tpu_custom_call.1} parent=1 // pred_check
      _
    $region39: #{tpu_custom_call.1} parent=1 // pred_check_branch
      %66 = sbr.rel (0) target = $region41
    $region40: #{tpu_custom_call.1} parent=1 // pred_region
      %67 = dma.done [#allocation7], 2048
    $region41: #{tpu_custom_call.1} parent=1 // pred_fallthru
      _
    %v69 = vld [vmem:[#allocation3] sm:$0xff]
    %v70 = vld [vmem:[#allocation3 + $0x8] sm:$0xff]
    %v71 = vpack.c.bf16 %v70, %v69
    %p72 = scmp.eq.s32.totalorder 0, 0
    // Predicated region
    $region42: #{tpu_custom_call.1} parent=1 // pred_check
      %p73 = pneg %p72
    $region43: #{tpu_custom_call.1} parent=1 // pred_check_branch
      %75 = sbr.rel (%p73) target = $region45
    $region44: #{tpu_custom_call.1} parent=1 // pred_region
      %v76 = vld [vmem:[%s4] sm:$0x1]
      %v78 = vlaneseq
      %v79 = vshrl.u32 %v78, 7
      %v80 = vsub.s32 0, %v79
      %v81 = vrot.slane %v76, %v80
      %v83 = vadd.f32 %v69, %v81
      %v84 = vadd.f32 %v70, %v81
      %85 = vst [vmem:[#allocation2] sm:$0xff] %v83
      %86 = vst [vmem:[#allocation2 + $0x8] sm:$0xff] %v84
    $region45: #{tpu_custom_call.1} parent=1 // pred_fallthru
      _
    %v87 = vld [vmem:[#allocation6] sm:$0xff]
    %v88 = vld [vmem:[#allocation6 + $0x8] sm:$0xff]
    %v89 = vld [vmem:[#allocation6 + $0x10] sm:$0xff]
    %v90 = vld [vmem:[#allocation6 + $0x18] sm:$0xff]
    %v91 = vld [vmem:[#allocation6 + $0x20] sm:$0xff]
    %v92 = vld [vmem:[#allocation6 + $0x28] sm:$0xff]
    %v93 = vld [vmem:[#allocation6 + $0x30] sm:$0xff]
    %v94 = vld [vmem:[#allocation6 + $0x38] sm:$0xff]
    %v95 = vld [vmem:[#allocation6 + $0x40] sm:$0xff]
    %v96 = vld [vmem:[#allocation6 + $0x48] sm:$0xff]
    %v97 = vld [vmem:[#allocation6 + $0x50] sm:$0xff]
    %v98 = vld [vmem:[#allocation6 + $0x58] sm:$0xff]
    %v99 = vld [vmem:[#allocation6 + $0x60] sm:$0xff]
    %v100 = vld [vmem:[#allocation6 + $0x68] sm:$0xff]
    %v101 = vld [vmem:[#allocation6 + $0x70] sm:$0xff]
    %v102 = vld [vmem:[#allocation6 + $0x78] sm:$0xff]
    %v103 = vld [vmem:[%s2] sm:$0x3]
    %v105 = vlaneseq
    %v106 = vshrl.u32 %v105, 7
    %v107 = vsub.s32 0, %v106
    %v108 = vrot.slane %v103, %v107
    %v109 = vlaneseq
    %v110 = vshrl.u32 %v109, 7
    %v111 = vsub.s32 1, %v110
    %v112 = vrot.slane %v103, %v111
    %v131 = vunpack.c.l.b16 %v87
    %v132 = vunpack.c.h.b16 %v87
    %v133 = vunpack.c.l.b16 %v88
    %v134 = vunpack.c.h.b16 %v88
    %v135 = vunpack.c.l.b16 %v89
    %v136 = vunpack.c.h.b16 %v89
    %v137 = vunpack.c.l.b16 %v90
    %v138 = vunpack.c.h.b16 %v90
    %v139 = vunpack.c.l.b16 %v91
    %v140 = vunpack.c.h.b16 %v91
    %v141 = vunpack.c.l.b16 %v92
    %v142 = vunpack.c.h.b16 %v92
    %v143 = vunpack.c.l.b16 %v93
    %v144 = vunpack.c.h.b16 %v93
    %v145 = vunpack.c.l.b16 %v94
    %v146 = vunpack.c.h.b16 %v94
    %v147 = vunpack.c.l.b16 %v95
    %v148 = vunpack.c.h.b16 %v95
    %v149 = vunpack.c.l.b16 %v96
    %v150 = vunpack.c.h.b16 %v96
    %v151 = vunpack.c.l.b16 %v97
    %v152 = vunpack.c.h.b16 %v97
    %v153 = vunpack.c.l.b16 %v98
    %v154 = vunpack.c.h.b16 %v98
    %v155 = vunpack.c.l.b16 %v99
    %v156 = vunpack.c.h.b16 %v99
    %v157 = vunpack.c.l.b16 %v100
    %v158 = vunpack.c.h.b16 %v100
    %v159 = vunpack.c.l.b16 %v101
    %v160 = vunpack.c.h.b16 %v101
    %v161 = vunpack.c.l.b16 %v102
    %v162 = vunpack.c.h.b16 %v102
    %v163 = vpack.c.b16 %v133, %v131
    %v164 = vpack.c.b16 %v134, %v132
    %v165 = vpack.c.b16 %v137, %v135
    %v166 = vpack.c.b16 %v138, %v136
    %v167 = vpack.c.b16 %v141, %v139
    %v168 = vpack.c.b16 %v142, %v140
    %v169 = vpack.c.b16 %v145, %v143
    %v170 = vpack.c.b16 %v146, %v144
    %v171 = vpack.c.b16 %v149, %v147
    %v172 = vpack.c.b16 %v150, %v148
    %v173 = vpack.c.b16 %v153, %v151
    %v174 = vpack.c.b16 %v154, %v152
    %v175 = vpack.c.b16 %v157, %v155
    %v176 = vpack.c.b16 %v158, %v156
    %v177 = vpack.c.b16 %v161, %v159
    %v178 = vpack.c.b16 %v162, %v160
    %195 = vmatprep.subr.bf16.mxu0 %v178
    %196 = vmatpush1.bf16.msra.mxu0 %v177
    %197 = vmatprep.subr.bf16.mxu0 %v176
    %198 = vmatpush1.bf16.msra.mxu0 %v175
    %199 = vmatprep.subr.bf16.mxu0 %v174
    %200 = vmatpush1.bf16.msra.mxu0 %v173
    %201 = vmatprep.subr.bf16.mxu0 %v172
    %202 = vmatpush1.bf16.msra.mxu0 %v171
    %203 = vmatprep.subr.bf16.mxu0 %v170
    %204 = vmatpush1.bf16.msra.mxu0 %v169
    %205 = vmatprep.subr.bf16.mxu0 %v168
    %206 = vmatpush1.bf16.msra.mxu0 %v167
    %207 = vmatprep.subr.bf16.mxu0 %v166
    %208 = vmatpush1.bf16.msra.mxu0 %v165
    %209 = vmatprep.subr.bf16.mxu0 %v164
    %210 = vmatpush1.bf16.msra.mxu0 %v163
    %211 = vmatprep.subr.bf16.mxu0 0
    %212 = vmatpush2.bf16.msra.mxu0 0
    %213 = vmatprep.subr.bf16.mxu0 0
    %214 = vmatpush2.bf16.msra.mxu0 0
    %215 = vmatprep.subr.bf16.mxu0 0
    %216 = vmatpush2.bf16.msra.mxu0 0
    %217 = vmatprep.subr.bf16.mxu0 0
    %218 = vmatpush2.bf16.msra.mxu0 0
    %219 = vmatprep.subr.bf16.mxu0 0
    %220 = vmatpush2.bf16.msra.mxu0 0
    %221 = vmatprep.subr.bf16.mxu0 0
    %222 = vmatpush2.bf16.msra.mxu0 0
    %223 = vmatprep.subr.bf16.mxu0 0
    %224 = vmatpush2.bf16.msra.mxu0 0
    %225 = vmatprep.subr.bf16.mxu0 0
    %226 = vmatpush2.bf16.msra.mxu0 0
    %227 = vmatprep.mubr.bf16.mxu0 0
    %228 = vmatmul.mubr.bf16.gmra.mxu0 %v71
    %v229 = vpop.f32.mrf.mxu0
    %v230 = vadd.f32 %v108, %v229
    %v231 = vpop.f32.mrf.mxu0
    %v232 = vadd.f32 %v112, %v231
    %v233 = vpop.f32.mrf.mxu0
    %v234 = vadd.f32 %v108, %v233
    %v235 = vpop.f32.mrf.mxu0
    %v236 = vadd.f32 %v112, %v235
    %237 = vdwg.mxu0
    %v238 = vmax.f32 %v230, 0.0
    %v239 = vmax.f32 %v232, 0.0
    %v240 = vmax.f32 %v234, 0.0
    %v241 = vmax.f32 %v236, 0.0
    %v242 = vld [vmem:[#allocation2] sm:$0xff]
    %v243 = vld [vmem:[#allocation2 + $0x8] sm:$0xff]
    %v244 = vpack.c.bf16 %v240, %v238
    %v245 = vpack.c.bf16 %v241, %v239
    %v246 = vld [vmem:[#allocation8] sm:$0xf]
    %v247 = vld [vmem:[#allocation8 + $0x4] sm:$0xf]
    %v248 = vld [vmem:[#allocation8 + $0x8] sm:$0xf]
    %v249 = vld [vmem:[#allocation8 + $0xc] sm:$0xf]
    %v250 = vld [vmem:[#allocation8 + $0x10] sm:$0xf]
    %v251 = vld [vmem:[#allocation8 + $0x14] sm:$0xf]
    %v252 = vld [vmem:[#allocation8 + $0x18] sm:$0xf]
    %v253 = vld [vmem:[#allocation8 + $0x1c] sm:$0xf]
    %v254 = vld [vmem:[#allocation8 + $0x20] sm:$0xf]
    %v255 = vld [vmem:[#allocation8 + $0x24] sm:$0xf]
    %v256 = vld [vmem:[#allocation8 + $0x28] sm:$0xf]
    %v257 = vld [vmem:[#allocation8 + $0x2c] sm:$0xf]
    %v258 = vld [vmem:[#allocation8 + $0x30] sm:$0xf]
    %v259 = vld [vmem:[#allocation8 + $0x34] sm:$0xf]
    %v260 = vld [vmem:[#allocation8 + $0x38] sm:$0xf]
    %v261 = vld [vmem:[#allocation8 + $0x3c] sm:$0xf]
    %v262 = vld [vmem:[#allocation8 + $0x40] sm:$0xf]
    %v263 = vld [vmem:[#allocation8 + $0x44] sm:$0xf]
    %v264 = vld [vmem:[#allocation8 + $0x48] sm:$0xf]
    %v265 = vld [vmem:[#allocation8 + $0x4c] sm:$0xf]
    %v266 = vld [vmem:[#allocation8 + $0x50] sm:$0xf]
    %v267 = vld [vmem:[#allocation8 + $0x54] sm:$0xf]
    %v268 = vld [vmem:[#allocation8 + $0x58] sm:$0xf]
    %v269 = vld [vmem:[#allocation8 + $0x5c] sm:$0xf]
    %v270 = vld [vmem:[#allocation8 + $0x60] sm:$0xf]
    %v271 = vld [vmem:[#allocation8 + $0x64] sm:$0xf]
    %v272 = vld [vmem:[#allocation8 + $0x68] sm:$0xf]
    %v273 = vld [vmem:[#allocation8 + $0x6c] sm:$0xf]
    %v274 = vld [vmem:[#allocation8 + $0x70] sm:$0xf]
    %v275 = vld [vmem:[#allocation8 + $0x74] sm:$0xf]
    %v276 = vld [vmem:[#allocation8 + $0x78] sm:$0xf]
    %v277 = vld [vmem:[#allocation8 + $0x7c] sm:$0xf]
    %v310 = vunpack.c.l.b16 %v246
    %v311 = vunpack.c.l.b16 %v247
    %v312 = vunpack.c.l.b16 %v248
    %v313 = vunpack.c.l.b16 %v249
    %v314 = vunpack.c.l.b16 %v250
    %v315 = vunpack.c.l.b16 %v251
    %v316 = vunpack.c.l.b16 %v252
    %v317 = vunpack.c.l.b16 %v253
    %v318 = vunpack.c.l.b16 %v254
    %v319 = vunpack.c.l.b16 %v255
    %v320 = vunpack.c.l.b16 %v256
    %v321 = vunpack.c.l.b16 %v257
    %v322 = vunpack.c.l.b16 %v258
    %v323 = vunpack.c.l.b16 %v259
    %v324 = vunpack.c.l.b16 %v260
    %v325 = vunpack.c.l.b16 %v261
    %v326 = vunpack.c.l.b16 %v262
    %v327 = vunpack.c.l.b16 %v263
    %v328 = vunpack.c.l.b16 %v264
    %v329 = vunpack.c.l.b16 %v265
    %v330 = vunpack.c.l.b16 %v266
    %v331 = vunpack.c.l.b16 %v267
    %v332 = vunpack.c.l.b16 %v268
    %v333 = vunpack.c.l.b16 %v269
    %v334 = vunpack.c.l.b16 %v270
    %v335 = vunpack.c.l.b16 %v271
    %v336 = vunpack.c.l.b16 %v272
    %v337 = vunpack.c.l.b16 %v273
    %v338 = vunpack.c.l.b16 %v274
    %v339 = vunpack.c.l.b16 %v275
    %v340 = vunpack.c.l.b16 %v276
    %v341 = vunpack.c.l.b16 %v277
    %v342 = vpack.c.b16 %v311, %v310
    %v343 = vpack.c.b16 %v313, %v312
    %v344 = vpack.c.b16 %v315, %v314
    %v345 = vpack.c.b16 %v317, %v316
    %v346 = vpack.c.b16 %v319, %v318
    %v347 = vpack.c.b16 %v321, %v320
    %v348 = vpack.c.b16 %v323, %v322
    %v349 = vpack.c.b16 %v325, %v324
    %v350 = vpack.c.b16 %v327, %v326
    %v351 = vpack.c.b16 %v329, %v328
    %v352 = vpack.c.b16 %v331, %v330
    %v353 = vpack.c.b16 %v333, %v332
    %v354 = vpack.c.b16 %v335, %v334
    %v355 = vpack.c.b16 %v337, %v336
    %v356 = vpack.c.b16 %v339, %v338
    %v357 = vpack.c.b16 %v341, %v340
    %374 = vmatprep.subr.bf16.mxu0 0
    %375 = vmatpush1.bf16.msra.mxu0 %v349
    %376 = vmatprep.subr.bf16.mxu0 0
    %377 = vmatpush1.bf16.msra.mxu0 %v348
    %378 = vmatprep.subr.bf16.mxu0 0
    %379 = vmatpush1.bf16.msra.mxu0 %v347
    %380 = vmatprep.subr.bf16.mxu0 0
    %381 = vmatpush1.bf16.msra.mxu0 %v346
    %382 = vmatprep.subr.bf16.mxu0 0
    %383 = vmatpush1.bf16.msra.mxu0 %v345
    %384 = vmatprep.subr.bf16.mxu0 0
    %385 = vmatpush1.bf16.msra.mxu0 %v344
    %386 = vmatprep.subr.bf16.mxu0 0
    %387 = vmatpush1.bf16.msra.mxu0 %v343
    %388 = vmatprep.subr.bf16.mxu0 0
    %389 = vmatpush1.bf16.msra.mxu0 %v342
    %390 = vmatprep.subr.bf16.mxu0 0
    %391 = vmatpush2.bf16.msra.mxu0 %v357
    %392 = vmatprep.subr.bf16.mxu0 0
    %393 = vmatpush2.bf16.msra.mxu0 %v356
    %394 = vmatprep.subr.bf16.mxu0 0
    %395 = vmatpush2.bf16.msra.mxu0 %v355
    %396 = vmatprep.subr.bf16.mxu0 0
    %397 = vmatpush2.bf16.msra.mxu0 %v354
    %398 = vmatprep.subr.bf16.mxu0 0
    %399 = vmatpush2.bf16.msra.mxu0 %v353
    %400 = vmatprep.subr.bf16.mxu0 0
    %401 = vmatpush2.bf16.msra.mxu0 %v352
    %402 = vmatprep.subr.bf16.mxu0 0
    %403 = vmatpush2.bf16.msra.mxu0 %v351
    %404 = vmatprep.subr.bf16.mxu0 0
    %405 = vmatpush2.bf16.msra.mxu0 %v350
    %406 = vmatprep.mubr.bf16.mxu0 %v245
    %407 = vmatmul.mubr.bf16.gmra.mxu0 %v244
    %v408 = vpop.f32.mrf.mxu0
    %v409 = vadd.f32 0.0, %v408
    %v410 = vpop.f32.mrf.mxu0
    %v411 = vpop.f32.mrf.mxu0
    %v412 = vadd.f32 0.0, %v411
    %v413 = vpop.f32.mrf.mxu0
    %414 = vdwg.mxu0
    %v415 = vadd.f32 %v242, %v409
    %v416 = vadd.f32 %v243, %v412
    %417 = vst [vmem:[#allocation2] sm:$0xff] %v415
    %418 = vst [vmem:[#allocation2 + $0x8] sm:$0xff] %v416
    // Predicated region
    $region46: #{tpu_custom_call.1} parent=1 // pred_check
      %p419 = pneg %p72
    $region47: #{tpu_custom_call.1} parent=1 // pred_check_branch
      %421 = sbr.rel (%p419) target = $region49
    $region48: #{tpu_custom_call.1} parent=1 // pred_region
      %v422 = vld [vmem:[#allocation2] sm:$0xff]
      %v423 = vld [vmem:[#allocation2 + $0x8] sm:$0xff]
      %424 = vadd.xlane.f32.xlu0 %v422
      %v425 = vpop.xlane.xlu0 %424
      %426 = vadd.xlane.f32.xlu0 %v423
      %v427 = vpop.xlane.xlu0 %426
      %v428 = vrcp.pop 128.0
      %v429 = vmul.f32 %v425, %v428
      %v430 = vmul.f32 %v427, %v428
      %v431 = vsub.f32 %v422, %v429
      %v432 = vsub.f32 %v423, %v430
      %v433 = vmul.f32 %v431, %v431
      %v434 = vmul.f32 %v432, %v432
      %435 = vadd.xlane.f32.xlu0 %v433
      %v436 = vpop.xlane.xlu0 %435
      %437 = vadd.xlane.f32.xlu0 %v434
      %v438 = vpop.xlane.xlu0 %437
      %v439 = vmul.f32 %v436, %v428
      %v440 = vmul.f32 %v438, %v428
      %v441 = vadd.f32 %v439, 1e-05
      %v442 = vadd.f32 %v440, 1e-05
      %v443 = vrsqrt.pop %v441
      %v444 = vrsqrt.pop %v442
      %v445 = vmul.f32 %v431, %v443
      %v446 = vmul.f32 %v432, %v444
      %v447 = vld [vmem:[%s5] sm:$0x1]
      %v449 = vlaneseq
      %v450 = vshrl.u32 %v449, 7
      %v451 = vsub.s32 0, %v450
      %v452 = vrot.slane %v447, %v451
      %v454 = vmul.f32 %v445, %v452
      %v455 = vmul.f32 %v446, %v452
      %v456 = vld [vmem:[%s6] sm:$0x1]
      %v458 = vlaneseq
      %v459 = vshrl.u32 %v458, 7
      %v460 = vsub.s32 0, %v459
      %v461 = vrot.slane %v456, %v460
      %v463 = vadd.f32 %v454, %v461
      %v464 = vadd.f32 %v455, %v461
      %465 = vst [vmem:[#allocation9] sm:$0xff] %v463
      %466 = vst [vmem:[#allocation9 + $0x8] sm:$0xff] %v464
    $region49: #{tpu_custom_call.1} parent=1 // pred_fallthru
      _
    // Predicated region
    $region50: #{tpu_custom_call.1} parent=1 // pred_check
      _
    $region51: #{tpu_custom_call.1} parent=1 // pred_check_branch
      %468 = sbr.rel (0) target = $region53
    $region52: #{tpu_custom_call.1} parent=1 // pred_region
      %s470 = ssub.s32 256, 256
      %471 = vsyncadd [#allocation5], %s470
      %s472 = sshll.u32 [#allocation9], 4
      %s473 = int_to_ptr.vmem [resolvable:$true] %s472
      %478 = dma.vmem_to_hbm [thread:$0]  %s473, 256, %s7, [#allocation5], 128, 128, 8
    $region53: #{tpu_custom_call.1} parent=1 // pred_fallthru
      _
    // Predicated region
    $region54: #{tpu_custom_call.1} parent=1 // pred_check
      _
    $region55: #{tpu_custom_call.1} parent=1 // pred_check_branch
      %480 = sbr.rel (0) target = $region57
    $region56: #{tpu_custom_call.1} parent=1 // pred_region
      %481 = dma.done [#allocation5], 256
    $region57: #{tpu_custom_call.1} parent=1 // pred_fallthru
      _
    %482 = vsyncpa [#allocation4], 1
    %483 = vsyncpa [#allocation7], 1
    %484 = vsyncpa [#allocation5], 1

</llo_original>
